<compile_context>
chip_gen: v7x
topology: tpu7x:2x2x1
jax: 0.10.0
libtpu: 0.0.40
codegen_flags: <defaults>
</compile_context>

<pallas_src>
import functools
import math

import jax
import jax.numpy as jnp
from jax.experimental import pallas as pl
from jax.experimental.pallas import tpu as pltpu


def _round_up(x, m):
    return ((x + m - 1) // m) * m


def _mish(x):
    # Mish(x) = x * tanh(softplus(x)); numerically-stable softplus in f32.
    sp = jnp.where(x > 20.0, x, jnp.log1p(jnp.exp(jnp.minimum(x, 20.0))))
    return x * jnp.tanh(sp)


# ----------------------------------------------------------------------------
# Pallas kernel: fused time-encoder + residual add + 3-layer MLP head.
# ----------------------------------------------------------------------------
def _mlp_kernel(
    gf_ref,        # [TILE_B, D]            f32  concat(x, cond) batch tile
    emb_ref,       # [8, D] or [TILE_B, D]  f32  sinusoidal timestep embedding
    te_w1_ref,     # [D, 4D]                bf16
    te_b1_ref,     # [1, 4D]                f32
    te_w2_ref,     # [4D, D]                bf16
    te_b2_ref,     # [1, D]                 f32
    d1_w_ref,      # [D, 256]               bf16
    d1_b_ref,      # [1, 256]               f32
    d2_w_ref,      # [256, 128]             bf16
    d2_b_ref,      # [1, 128]               f32
    out_w_ref,     # [128, OUT_PAD]         bf16 (zero-padded cols)
    out_b_ref,     # [1, OUT_PAD]           f32  (zero-padded cols)
    o_ref,         # [TILE_B, OUT_PAD]      f32
    *,
    time_is_scalar: bool,
):
    f32 = jnp.float32
    bf16 = jnp.bfloat16

    # ---- time encoder: Linear -> Mish -> Linear (bf16 MXU, f32 accumulate) ----
    emb = emb_ref[...]
    h = jnp.dot(emb.astype(bf16), te_w1_ref[...],
                preferred_element_type=f32) + te_b1_ref[...]
    h = _mish(h)                         # f32 elementwise (EUP: exp / tanh)
    te = jnp.dot(h.astype(bf16), te_w2_ref[...],
                 preferred_element_type=f32) + te_b2_ref[...]

    # ---- residual: global_feature + time_encoding ------------------------------
    if time_is_scalar:
        # Scalar timestep -> every row of `te` is identical; broadcast row 0.
        g = gf_ref[...] + te[0:1, :]
    else:
        g = gf_ref[...] + te

    # ---- head: dense1 -> ReLU -> dense2 -> ReLU -> output -----------------------
    h1 = jnp.dot(g.astype(bf16), d1_w_ref[...],
                 preferred_element_type=f32) + d1_b_ref[...]
    h1 = jnp.maximum(h1, 0.0)
    h2 = jnp.dot(h1.astype(bf16), d2_w_ref[...],
                 preferred_element_type=f32) + d2_b_ref[...]
    h2 = jnp.maximum(h2, 0.0)
    o_ref[...] = jnp.dot(h2.astype(bf16), out_w_ref[...],
                         preferred_element_type=f32) + out_b_ref[...]


# ----------------------------------------------------------------------------
# JAX glue.
# ----------------------------------------------------------------------------
def sinusoidal_pos_emb(timesteps, dim, max_value):
    """diffusion_policy SinusoidalPosEmb with configurable max period."""
    half = dim // 2
    scale = math.log(max_value) / (half - 1)
    freqs = jnp.exp(-scale * jnp.arange(half, dtype=jnp.float32))
    ang = timesteps.astype(jnp.float32)[:, None] * freqs[None, :]
    return jnp.concatenate([jnp.sin(ang), jnp.cos(ang)], axis=-1)  # [N, dim]


def make_params(key, in_channels, out_channels):
    """Deterministic synthetic parameters (shapes match the PyTorch module, f32)."""
    d = in_channels

    def linear(k, fan_in, fan_out):
        kw, kb = jax.random.split(k)
        bound = 1.0 / math.sqrt(fan_in)
        w = jax.random.uniform(kw, (fan_in, fan_out), jnp.float32, -bound, bound)
        b = jax.random.uniform(kb, (1, fan_out), jnp.float32, -bound, bound)
        return w, b

    keys = jax.random.split(key, 5)
    te_w1, te_b1 = linear(keys[0], d, 4 * d)          # time_encoder Linear(d, 4d)
    te_w2, te_b2 = linear(keys[1], 4 * d, d)          # time_encoder Linear(4d, d)
    d1_w, d1_b = linear(keys[2], d, 256)              # dense1
    d2_w, d2_b = linear(keys[3], 256, 128)            # dense2
    o_w, o_b = linear(keys[4], 128, out_channels)     # output
    return (te_w1, te_b1, te_w2, te_b2, d1_w, d1_b, d2_w, d2_b, o_w, o_b)


def _const_spec(shape):
    # Whole-array block, constant block index -> fetched once, VMEM-resident.
    return pl.BlockSpec(shape, lambda i: (0, 0))


def mlp_forward(x, cond, timestep, params, *, in_channels, out_channels,
                action_horizon, tile_b_max=256):
    te_w1, te_b1, te_w2, te_b2, d1_w, d1_b, d2_w, d2_b, o_w, o_b = params
    f32, bf16 = jnp.float32, jnp.bfloat16
    B = x.shape[0]
    D = in_channels

    # ---- batch tiling / lane padding -------------------------------------------
    tile_b = min(tile_b_max, _round_up(max(B, 1), 8))     # sublane-aligned tile
    padded_b = _round_up(B, tile_b)
    out_pad = _round_up(out_channels, 128)                 # lane-dense output stores

    gf = jnp.concatenate([x, cond], axis=-1).astype(f32)   # [B, D]
    if padded_b != B:
        gf = jnp.pad(gf, ((0, padded_b - B), (0, 0)))

    # ---- timestep embedding (dedup when timestep is a scalar broadcast) --------
    t_arr = jnp.asarray(timestep)
    time_is_scalar = (t_arr.ndim == 0) or (t_arr.size == 1)
    if time_is_scalar:
        ts = jnp.broadcast_to(t_arr.reshape(-1).astype(jnp.int32), (8,))
        emb = sinusoidal_pos_emb(ts, D, action_horizon)     # [8, D], identical rows
        emb_spec = _const_spec((8, D))
    else:
        ts = jnp.broadcast_to(t_arr.reshape(-1).astype(jnp.int32), (B,))
        emb = sinusoidal_pos_emb(ts, D, action_horizon)     # [B, D]
        if padded_b != B:
            emb = jnp.pad(emb, ((0, padded_b - B), (0, 0)))
        emb_spec = pl.BlockSpec((tile_b, D), lambda i: (i, 0))

    # ---- weights: bf16 in HBM, resident across the batch grid ------------------
    o_w_pad = jnp.pad(o_w, ((0, 0), (0, out_pad - out_channels)))
    o_b_pad = jnp.pad(o_b, ((0, 0), (0, out_pad - out_channels)))
    weights = (
        te_w1.astype(bf16), te_b1.astype(f32),
        te_w2.astype(bf16), te_b2.astype(f32),
        d1_w.astype(bf16), d1_b.astype(f32),
        d2_w.astype(bf16), d2_b.astype(f32),
        o_w_pad.astype(bf16), o_b_pad.astype(f32),
    )
    weight_specs = [_const_spec(w.shape) for w in weights]

    grid = (padded_b // tile_b,)

    # ---- advisory cost estimate -------------------------------------------------
    flops = 2 * padded_b * (D * 256 + 256 * 128 + 128 * out_pad)
    flops += 2 * emb.shape[0] * (D * 4 * D + 4 * D * D)     # tiny time encoder
    transc = 3 * emb.shape[0] * 4 * D                       # exp/log1p/tanh in Mish
    bytes_accessed = int(
        gf.size * 4 + emb.size * 4 + padded_b * out_pad * 4
        + sum(int(w.size) * w.dtype.itemsize for w in weights)
    )

    out = pl.pallas_call(
        functools.partial(_mlp_kernel, time_is_scalar=time_is_scalar),
        out_shape=jax.ShapeDtypeStruct((padded_b, out_pad), f32),
        grid=grid,
        in_specs=[pl.BlockSpec((tile_b, D), lambda i: (i, 0)), emb_spec]
                 + weight_specs,
        out_specs=pl.BlockSpec((tile_b, out_pad), lambda i: (i, 0)),
        compiler_params=pltpu.CompilerParams(
            dimension_semantics=("parallel",)),
        cost_estimate=pl.CostEstimate(
            flops=flops, transcendentals=transc, bytes_accessed=bytes_accessed),
    )(gf, emb, *weights)

    return out[:B, :out_channels]


def mlp_reference(x, cond, timestep, params, *, in_channels, out_channels,
                  action_horizon):
    """Pure-JAX f32 reference (mirrors the PyTorch forward)."""
    te_w1, te_b1, te_w2, te_b2, d1_w, d1_b, d2_w, d2_b, o_w, o_b = params
    B = x.shape[0]
    timesteps = jnp.broadcast_to(
        jnp.asarray(timestep).reshape(-1).astype(jnp.int32), (B,))
    emb = sinusoidal_pos_emb(timesteps, in_channels, action_horizon)
    h = emb @ te_w1 + te_b1
    h = h * jnp.tanh(jax.nn.softplus(h))               # Mish
    te = h @ te_w2 + te_b2
    g = jnp.concatenate([x, cond], axis=-1) + te
    h1 = jnp.maximum(g @ d1_w + d1_b, 0.0)
    h2 = jnp.maximum(h1 @ d2_w + d2_b, 0.0)
    return h2 @ o_w + o_b


if __name__ == "__main__":
    # Small, module-consistent shapes: in_channels = x_dim + cond_dim.
    batch = 2
    x_dim, cond_dim = 10, 6
    in_channels = x_dim + cond_dim      # 16
    out_channels = 8
    action_horizon = 16

    key = jax.random.PRNGKey(0)
    kx, kc, kp = jax.random.split(key, 3)
    x = jax.random.normal(kx, (batch, x_dim), jnp.float32)
    cond = jax.random.normal(kc, (batch, cond_dim), jnp.float32)
    params = make_params(kp, in_channels, out_channels)

    # --- case 1: scalar timestep (the module's standard path; time-encoder dedup)
    timestep = 3
    out = mlp_forward(
        x, cond, timestep, params,
        in_channels=in_channels, out_channels=out_channels,
        action_horizon=action_horizon,
    )
    out = jax.block_until_ready(out)
    ref = mlp_reference(
        x, cond, timestep, params,
        in_channels=in_channels, out_channels=out_channels,
        action_horizon=action_horizon,
    )
    assert out.shape == (batch, out_channels)
    # bf16 matmul operands vs f32 reference -> loosened tolerance.
    assert jnp.allclose(out, ref, atol=5e-2, rtol=5e-2), "scalar-timestep mismatch"

    # --- case 2: per-sample timesteps (no dedup; emb tiled with the batch)
    timestep_vec = jnp.array([1, 5], dtype=jnp.int32)
    out2 = mlp_forward(
        x, cond, timestep_vec, params,
        in_channels=in_channels, out_channels=out_channels,
        action_horizon=action_horizon,
    )
    out2 = jax.block_until_ready(out2)
    ref2 = mlp_reference(
        x, cond, timestep_vec, params,
        in_channels=in_channels, out_channels=out_channels,
        action_horizon=action_horizon,
    )
    assert jnp.allclose(out2, ref2, atol=5e-2, rtol=5e-2), "per-sample mismatch"

    print("KERNEL_OK")
</pallas_src>

<mosaic_0001>
module attributes {stable_mosaic.version = 11 : i64} {
  func.func @_mlp_kernel(%arg0: i32, %arg1: memref<8x16xf32, #tpu.memory_space<vmem>>, %arg2: memref<8x16xf32, #tpu.memory_space<vmem>>, %arg3: memref<16x64xbf16, #tpu.memory_space<vmem>>, %arg4: memref<1x64xf32, #tpu.memory_space<vmem>>, %arg5: memref<64x16xbf16, #tpu.memory_space<vmem>>, %arg6: memref<1x16xf32, #tpu.memory_space<vmem>>, %arg7: memref<16x256xbf16, #tpu.memory_space<vmem>>, %arg8: memref<1x256xf32, #tpu.memory_space<vmem>>, %arg9: memref<256x128xbf16, #tpu.memory_space<vmem>>, %arg10: memref<1x128xf32, #tpu.memory_space<vmem>>, %arg11: memref<128x128xbf16, #tpu.memory_space<vmem>>, %arg12: memref<1x128xf32, #tpu.memory_space<vmem>>, %arg13: memref<8x128xf32, #tpu.memory_space<vmem>>) attributes {dimension_semantics = [#tpu.dimension_semantics<parallel>], iteration_bounds = array<i64: 1>, scalar_prefetch = 0 : i64, scratch_operands = 0 : i64, tpu.core_type = #tpu.core_type<tc>, window_params = [{transform_indices = @transform_0, window_bounds = array<i64: 8, 16>}, {pipeline_mode = #tpu.pipeline_mode<synchronous>, transform_indices = @transform_1, window_bounds = array<i64: 8, 16>}, {pipeline_mode = #tpu.pipeline_mode<synchronous>, transform_indices = @transform_2, window_bounds = array<i64: 16, 64>}, {pipeline_mode = #tpu.pipeline_mode<synchronous>, transform_indices = @transform_3, window_bounds = array<i64: 1, 64>}, {pipeline_mode = #tpu.pipeline_mode<synchronous>, transform_indices = @transform_4, window_bounds = array<i64: 64, 16>}, {pipeline_mode = #tpu.pipeline_mode<synchronous>, transform_indices = @transform_5, window_bounds = array<i64: 1, 16>}, {pipeline_mode = #tpu.pipeline_mode<synchronous>, transform_indices = @transform_6, window_bounds = array<i64: 16, 256>}, {pipeline_mode = #tpu.pipeline_mode<synchronous>, transform_indices = @transform_7, window_bounds = array<i64: 1, 256>}, {pipeline_mode = #tpu.pipeline_mode<synchronous>, transform_indices = @transform_8, window_bounds = array<i64: 256, 128>}, {pipeline_mode = #tpu.pipeline_mode<synchronous>, transform_indices = @transform_9, window_bounds = array<i64: 1, 128>}, {pipeline_mode = #tpu.pipeline_mode<synchronous>, transform_indices = @transform_10, window_bounds = array<i64: 128, 128>}, {pipeline_mode = #tpu.pipeline_mode<synchronous>, transform_indices = @transform_11, window_bounds = array<i64: 1, 128>}, {transform_indices = @transform_12, window_bounds = array<i64: 8, 128>}]} {
    %c0 = arith.constant 0 : index
    %c0_0 = arith.constant 0 : index
    %0 = vector.load %arg2[%c0, %c0_0] : memref<8x16xf32, #tpu.memory_space<vmem>>, vector<8x16xf32>
    %1 = arith.truncf %0 : vector<8x16xf32> to vector<8x16xbf16>
    %c0_1 = arith.constant 0 : index
    %c0_2 = arith.constant 0 : index
    %2 = vector.load %arg3[%c0_1, %c0_2] : memref<16x64xbf16, #tpu.memory_space<vmem>>, vector<16x64xbf16>
    %cst = arith.constant dense<0.000000e+00> : vector<8x64xf32>
    %3 = tpu.matmul %1, %2, %cst {dimension_numbers = #tpu.dot_dimension_numbers<[1], [0], [0], [1], [0, 0, 1, 1], [], []>} : vector<8x16xbf16>, vector<16x64xbf16>, vector<8x64xf32> -> vector<8x64xf32>
    %c0_3 = arith.constant 0 : index
    %c0_4 = arith.constant 0 : index
    %4 = vector.load %arg4[%c0_3, %c0_4] : memref<1x64xf32, #tpu.memory_space<vmem>>, vector<1x64xf32>
    %5 = vector.broadcast %4 : vector<1x64xf32> to vector<8x64xf32>
    %6 = arith.addf %3, %5 : vector<8x64xf32>
    %cst_5 = arith.constant 2.000000e+01 : f32
    %7 = vector.broadcast %cst_5 : f32 to vector<8x64xf32>
    %8 = arith.cmpf ogt, %6, %7 : vector<8x64xf32>
    %cst_6 = arith.constant 2.000000e+01 : f32
    %9 = vector.broadcast %cst_6 : f32 to vector<8x64xf32>
    %10 = arith.minimumf %6, %9 : vector<8x64xf32>
    %11 = math.exp %10 : vector<8x64xf32>
    %12 = math.log1p %11 : vector<8x64xf32>
    %13 = arith.select %8, %6, %12 : vector<8x64xi1>, vector<8x64xf32>
    %14 = math.tanh %13 : vector<8x64xf32>
    %15 = arith.mulf %6, %14 : vector<8x64xf32>
    %16 = arith.truncf %15 : vector<8x64xf32> to vector<8x64xbf16>
    %c0_7 = arith.constant 0 : index
    %c0_8 = arith.constant 0 : index
    %17 = vector.load %arg5[%c0_7, %c0_8] : memref<64x16xbf16, #tpu.memory_space<vmem>>, vector<64x16xbf16>
    %cst_9 = arith.constant dense<0.000000e+00> : vector<8x16xf32>
    %18 = tpu.matmul %16, %17, %cst_9 {dimension_numbers = #tpu.dot_dimension_numbers<[1], [0], [0], [1], [0, 0, 1, 1], [], []>} : vector<8x64xbf16>, vector<64x16xbf16>, vector<8x16xf32> -> vector<8x16xf32>
    %c0_10 = arith.constant 0 : index
    %c0_11 = arith.constant 0 : index
    %19 = vector.load %arg6[%c0_10, %c0_11] : memref<1x16xf32, #tpu.memory_space<vmem>>, vector<1x16xf32>
    %20 = vector.broadcast %19 : vector<1x16xf32> to vector<8x16xf32>
    %21 = arith.addf %18, %20 : vector<8x16xf32>
    %c0_12 = arith.constant 0 : index
    %c0_13 = arith.constant 0 : index
    %22 = vector.load %arg1[%c0_12, %c0_13] : memref<8x16xf32, #tpu.memory_space<vmem>>, vector<8x16xf32>
    %23 = vector.extract_strided_slice %21 {offsets = [0, 0], sizes = [1, 16], strides = [1, 1]} : vector<8x16xf32> to vector<1x16xf32>
    %24 = vector.broadcast %23 : vector<1x16xf32> to vector<8x16xf32>
    %25 = arith.addf %22, %24 : vector<8x16xf32>
    %26 = arith.truncf %25 : vector<8x16xf32> to vector<8x16xbf16>
    %c0_14 = arith.constant 0 : index
    %c0_15 = arith.constant 0 : index
    %27 = vector.load %arg7[%c0_14, %c0_15] : memref<16x256xbf16, #tpu.memory_space<vmem>>, vector<16x256xbf16>
    %cst_16 = arith.constant dense<0.000000e+00> : vector<8x256xf32>
    %28 = tpu.matmul %26, %27, %cst_16 {dimension_numbers = #tpu.dot_dimension_numbers<[1], [0], [0], [1], [0, 0, 1, 1], [], []>} : vector<8x16xbf16>, vector<16x256xbf16>, vector<8x256xf32> -> vector<8x256xf32>
    %c0_17 = arith.constant 0 : index
    %c0_18 = arith.constant 0 : index
    %29 = vector.load %arg8[%c0_17, %c0_18] : memref<1x256xf32, #tpu.memory_space<vmem>>, vector<1x256xf32>
    %30 = vector.broadcast %29 : vector<1x256xf32> to vector<8x256xf32>
    %31 = arith.addf %28, %30 : vector<8x256xf32>
    %cst_19 = arith.constant 0.000000e+00 : f32
    %32 = vector.broadcast %cst_19 : f32 to vector<8x256xf32>
    %33 = arith.maximumf %31, %32 : vector<8x256xf32>
    %34 = arith.truncf %33 : vector<8x256xf32> to vector<8x256xbf16>
    %c0_20 = arith.constant 0 : index
    %c0_21 = arith.constant 0 : index
    %35 = vector.load %arg9[%c0_20, %c0_21] : memref<256x128xbf16, #tpu.memory_space<vmem>>, vector<256x128xbf16>
    %cst_22 = arith.constant dense<0.000000e+00> : vector<8x128xf32>
    %36 = tpu.matmul %34, %35, %cst_22 {dimension_numbers = #tpu.dot_dimension_numbers<[1], [0], [0], [1], [0, 0, 1, 1], [], []>} : vector<8x256xbf16>, vector<256x128xbf16>, vector<8x128xf32> -> vector<8x128xf32>
    %c0_23 = arith.constant 0 : index
    %c0_24 = arith.constant 0 : index
    %37 = vector.load %arg10[%c0_23, %c0_24] : memref<1x128xf32, #tpu.memory_space<vmem>>, vector<1x128xf32>
    %38 = vector.broadcast %37 : vector<1x128xf32> to vector<8x128xf32>
    %39 = arith.addf %36, %38 : vector<8x128xf32>
    %cst_25 = arith.constant 0.000000e+00 : f32
    %40 = vector.broadcast %cst_25 : f32 to vector<8x128xf32>
    %41 = arith.maximumf %39, %40 : vector<8x128xf32>
    %42 = arith.truncf %41 : vector<8x128xf32> to vector<8x128xbf16>
    %c0_26 = arith.constant 0 : index
    %c0_27 = arith.constant 0 : index
    %43 = vector.load %arg11[%c0_26, %c0_27] : memref<128x128xbf16, #tpu.memory_space<vmem>>, vector<128x128xbf16>
    %cst_28 = arith.constant dense<0.000000e+00> : vector<8x128xf32>
    %44 = tpu.matmul %42, %43, %cst_28 {dimension_numbers = #tpu.dot_dimension_numbers<[1], [0], [0], [1], [0, 0, 1, 1], [], []>} : vector<8x128xbf16>, vector<128x128xbf16>, vector<8x128xf32> -> vector<8x128xf32>
    %c0_29 = arith.constant 0 : index
    %c0_30 = arith.constant 0 : index
    %45 = vector.load %arg12[%c0_29, %c0_30] : memref<1x128xf32, #tpu.memory_space<vmem>>, vector<1x128xf32>
    %46 = vector.broadcast %45 : vector<1x128xf32> to vector<8x128xf32>
    %47 = arith.addf %44, %46 : vector<8x128xf32>
    %c0_31 = arith.constant 0 : index
    %c0_32 = arith.constant 0 : index
    %48 = vector.load %arg13[%c0_31, %c0_32] : memref<8x128xf32, #tpu.memory_space<vmem>>, vector<8x128xf32>
    tpu.vector_store %arg13[%c0_31, %c0_32], %47 {strides = array<i32>} : memref<8x128xf32, #tpu.memory_space<vmem>>, vector<8x128xf32>,
    return
  }
  func.func @transform_0(%arg0: i32) -> (i32, i32) {
    %c0_i32 = arith.constant 0 : i32
    %c0_i32_0 = arith.constant 0 : i32
    return %arg0, %c0_i32 : i32, i32
  }
  func.func @transform_1(%arg0: i32) -> (i32, i32) {
    %c0_i32 = arith.constant 0 : i32
    %c0_i32_0 = arith.constant 0 : i32
    %c0_i32_1 = arith.constant 0 : i32
    return %c0_i32, %c0_i32_0 : i32, i32
  }
  func.func @transform_2(%arg0: i32) -> (i32, i32) {
    %c0_i32 = arith.constant 0 : i32
    %c0_i32_0 = arith.constant 0 : i32
    %c0_i32_1 = arith.constant 0 : i32
    return %c0_i32, %c0_i32_0 : i32, i32
  }
  func.func @transform_3(%arg0: i32) -> (i32, i32) {
    %c0_i32 = arith.constant 0 : i32
    %c0_i32_0 = arith.constant 0 : i32
    %c0_i32_1 = arith.constant 0 : i32
    return %c0_i32, %c0_i32_0 : i32, i32
  }
  func.func @transform_4(%arg0: i32) -> (i32, i32) {
    %c0_i32 = arith.constant 0 : i32
    %c0_i32_0 = arith.constant 0 : i32
    %c0_i32_1 = arith.constant 0 : i32
    return %c0_i32, %c0_i32_0 : i32, i32
  }
  func.func @transform_5(%arg0: i32) -> (i32, i32) {
    %c0_i32 = arith.constant 0 : i32
    %c0_i32_0 = arith.constant 0 : i32
    %c0_i32_1 = arith.constant 0 : i32
    return %c0_i32, %c0_i32_0 : i32, i32
  }
  func.func @transform_6(%arg0: i32) -> (i32, i32) {
    %c0_i32 = arith.constant 0 : i32
    %c0_i32_0 = arith.constant 0 : i32
    %c0_i32_1 = arith.constant 0 : i32
    return %c0_i32, %c0_i32_0 : i32, i32
  }
  func.func @transform_7(%arg0: i32) -> (i32, i32) {
    %c0_i32 = arith.constant 0 : i32
    %c0_i32_0 = arith.constant 0 : i32
    %c0_i32_1 = arith.constant 0 : i32
    return %c0_i32, %c0_i32_0 : i32, i32
  }
  func.func @transform_8(%arg0: i32) -> (i32, i32) {
    %c0_i32 = arith.constant 0 : i32
    %c0_i32_0 = arith.constant 0 : i32
    %c0_i32_1 = arith.constant 0 : i32
    return %c0_i32, %c0_i32_0 : i32, i32
  }
  func.func @transform_9(%arg0: i32) -> (i32, i32) {
    %c0_i32 = arith.constant 0 : i32
    %c0_i32_0 = arith.constant 0 : i32
    %c0_i32_1 = arith.constant 0 : i32
    return %c0_i32, %c0_i32_0 : i32, i32
  }
  func.func @transform_10(%arg0: i32) -> (i32, i32) {
    %c0_i32 = arith.constant 0 : i32
    %c0_i32_0 = arith.constant 0 : i32
    %c0_i32_1 = arith.constant 0 : i32
    return %c0_i32, %c0_i32_0 : i32, i32
  }
  func.func @transform_11(%arg0: i32) -> (i32, i32) {
    %c0_i32 = arith.constant 0 : i32
    %c0_i32_0 = arith.constant 0 : i32
    %c0_i32_1 = arith.constant 0 : i32
    return %c0_i32, %c0_i32_0 : i32, i32
  }
  func.func @transform_12(%arg0: i32) -> (i32, i32) {
    %c0_i32 = arith.constant 0 : i32
    %c0_i32_0 = arith.constant 0 : i32
    return %arg0, %c0_i32 : i32, i32
  }
}

</mosaic_0001>

<llo_original>
// kernel: tpu_custom_call.1
$region0: #{tpu_custom_call.1}
  #allocation0 [shape = 'u32[]', space=smem, size = 0x4, offset = 0x4, fixed_abs, tag = 'smem constant byte address 0x4 - core index']
  #allocation1 [shape = 'u32[144,128]{1,0:T(1,128)}', space=vmem, size = 0x12000, scoped, tag = 'internal scratch']
  %s0 = inlined_call_operand.vmem [shape: f32[8,16], index: 0, kind: input, shape index: {}]
  %s1 = inlined_call_operand.hbm [shape: f32[8,16], index: 1, kind: input, shape index: {}]
  %s2 = inlined_call_operand.hbm [shape: bf16[16,64], index: 2, kind: input, shape index: {}]
  %s3 = inlined_call_operand.vmem [shape: f32[1,64], index: 3, kind: input, shape index: {}]
  %s4 = inlined_call_operand.vmem [shape: bf16[64,16], index: 4, kind: input, shape index: {}]
  %s5 = inlined_call_operand.vmem [shape: f32[1,16], index: 5, kind: input, shape index: {}]
  %s6 = inlined_call_operand.hbm [shape: bf16[16,256], index: 6, kind: input, shape index: {}]
  %s7 = inlined_call_operand.vmem [shape: f32[1,256], index: 7, kind: input, shape index: {}]
  %s8 = inlined_call_operand.hbm [shape: bf16[256,128], index: 8, kind: input, shape index: {}]
  %s9 = inlined_call_operand.vmem [shape: f32[1,128], index: 9, kind: input, shape index: {}]
  %s10 = inlined_call_operand.vmem [shape: bf16[128,128], index: 10, kind: input, shape index: {}]
  %s11 = inlined_call_operand.vmem [shape: f32[1,128], index: 11, kind: input, shape index: {}]
  %s12 = inlined_call_operand.hbm [shape: f32[8,128], index: 12, kind: output, shape index: {}]
  %s13 = sld [smem:[#allocation0]]
  $region74: #{tpu_custom_call.1} parent=0
    _
  %s15 = ssub.s32 1, %s13
  %s16 = scalar_select 0, %s15, %s13
  $region1: #{tpu_custom_call.1} parent=0
    #allocation2 [shape = 'u8[4096]{0}', space=vmem, size = 0x1000, scoped, tag = 'input window, operand 1, single buffered']
    #allocation3 [shape = 's32[1]{0}', space=sflag, size = 0x4, scoped, tag = 'scoped memory for tpu_custom_call.1']
    #allocation4 [shape = 's32[1]{0}', space=sflag, size = 0x4, scoped, tag = 'scoped memory for tpu_custom_call.1']
    #allocation5 [shape = 'u8[4096]{0}', space=vmem, size = 0x1000, scoped, tag = 'input window, operand 2, single buffered']
    #allocation6 [shape = 's32[1]{0}', space=sflag, size = 0x4, scoped, tag = 'scoped memory for tpu_custom_call.1']
    #allocation7 [shape = 'u8[8192]{0}', space=vmem, size = 0x2000, scoped, tag = 'input window, operand 6, single buffered']
    #allocation8 [shape = 'u8[65536]{0}', space=vmem, size = 0x10000, scoped, tag = 'input window, operand 8, single buffered']
    #allocation9 [shape = 's32[1]{0}', space=sflag, size = 0x4, scoped, tag = 'scoped memory for tpu_custom_call.1']
    #allocation10 [shape = 'u8[4096]{0}', space=vmem, size = 0x1000, scoped, tag = 'output window, operand 0, single buffered']
    %17 = vsyncpa [#allocation3], 0
    %18 = vsyncpa [#allocation6], 0
    %19 = vsyncpa [#allocation9], 0
    %20 = vsyncpa [#allocation4], 0
    // Predicated region
    $region2: #{tpu_custom_call.1} parent=1 // pred_check
      _
    $region3: #{tpu_custom_call.1} parent=1 // pred_check_branch
      %22 = sbr.rel (0) target = $region5
    $region4: #{tpu_custom_call.1} parent=1 // pred_region
      _
    $region5: #{tpu_custom_call.1} parent=1 // pred_fallthru
      _
    // Predicated region
    $region6: #{tpu_custom_call.1} parent=1 // pred_check
      _
    $region7: #{tpu_custom_call.1} parent=1 // pred_check_branch
      %24 = sbr.rel (0) target = $region9
    $region8: #{tpu_custom_call.1} parent=1 // pred_region
      %s26 = ssub.s32 128, 128
      %27 = vsyncadd [#allocation3], %s26
      %s29 = sshll.u32 [#allocation2], 4
      %s30 = int_to_ptr.vmem [resolvable:$true] %s29
      %32 = dma.hbm_to_vmem [thread:$0]  %s1, 128, %s30, [#allocation3]
    $region9: #{tpu_custom_call.1} parent=1 // pred_fallthru
      _
    // Predicated region
    $region10: #{tpu_custom_call.1} parent=1 // pred_check
      _
    $region11: #{tpu_custom_call.1} parent=1 // pred_check_branch
      %34 = sbr.rel (0) target = $region13
    $region12: #{tpu_custom_call.1} parent=1 // pred_region
      %s36 = ssub.s32 128, 128
      %37 = vsyncadd [#allocation6], %s36
      %s38 = sshll.u32 [#allocation5], 4
      %s39 = int_to_ptr.vmem [resolvable:$true] %s38
      %44 = dma.hbm_to_vmem [thread:$0]  %s2, 128, %s39, [#allocation6], 64, 64, 4
    $region13: #{tpu_custom_call.1} parent=1 // pred_fallthru
      _
    // Predicated region
    $region14: #{tpu_custom_call.1} parent=1 // pred_check
      _
    $region15: #{tpu_custom_call.1} parent=1 // pred_check_branch
      %46 = sbr.rel (0) target = $region17
    $region16: #{tpu_custom_call.1} parent=1 // pred_region
      _
    $region17: #{tpu_custom_call.1} parent=1 // pred_fallthru
      _
    // Predicated region
    $region18: #{tpu_custom_call.1} parent=1 // pred_check
      _
    $region19: #{tpu_custom_call.1} parent=1 // pred_check_branch
      %48 = sbr.rel (0) target = $region21
    $region20: #{tpu_custom_call.1} parent=1 // pred_region
      _
    $region21: #{tpu_custom_call.1} parent=1 // pred_fallthru
      _
    // Predicated region
    $region22: #{tpu_custom_call.1} parent=1 // pred_check
      _
    $region23: #{tpu_custom_call.1} parent=1 // pred_check_branch
      %50 = sbr.rel (0) target = $region25
    $region24: #{tpu_custom_call.1} parent=1 // pred_region
      _
    $region25: #{tpu_custom_call.1} parent=1 // pred_fallthru
      _
    // Predicated region
    $region26: #{tpu_custom_call.1} parent=1 // pred_check
      _
    $region27: #{tpu_custom_call.1} parent=1 // pred_check_branch
      %52 = sbr.rel (0) target = $region29
    $region28: #{tpu_custom_call.1} parent=1 // pred_region
      %s54 = ssub.s32 256, 256
      %55 = vsyncadd [#allocation6], %s54
      %s56 = sshll.u32 [#allocation7], 4
      %s57 = int_to_ptr.vmem [resolvable:$true] %s56
      %62 = dma.hbm_to_vmem [thread:$0]  %s6, 256, %s57, [#allocation6], 128, 128, 8
    $region29: #{tpu_custom_call.1} parent=1 // pred_fallthru
      _
    // Predicated region
    $region30: #{tpu_custom_call.1} parent=1 // pred_check
      _
    $region31: #{tpu_custom_call.1} parent=1 // pred_check_branch
      %64 = sbr.rel (0) target = $region33
    $region32: #{tpu_custom_call.1} parent=1 // pred_region
      _
    $region33: #{tpu_custom_call.1} parent=1 // pred_fallthru
      _
    // Predicated region
    $region34: #{tpu_custom_call.1} parent=1 // pred_check
      _
    $region35: #{tpu_custom_call.1} parent=1 // pred_check_branch
      %66 = sbr.rel (0) target = $region37
    $region36: #{tpu_custom_call.1} parent=1 // pred_region
      %s68 = ssub.s32 2048, 2048
      %69 = vsyncadd [#allocation9], %s68
      %s70 = sshll.u32 [#allocation8], 4
      %s71 = int_to_ptr.vmem [resolvable:$true] %s70
      %76 = dma.hbm_to_vmem [thread:$0]  %s8, 2048, %s71, [#allocation9], 64, 64, 4
    $region37: #{tpu_custom_call.1} parent=1 // pred_fallthru
      _
    // Predicated region
    $region38: #{tpu_custom_call.1} parent=1 // pred_check
      _
    $region39: #{tpu_custom_call.1} parent=1 // pred_check_branch
      %78 = sbr.rel (0) target = $region41
    $region40: #{tpu_custom_call.1} parent=1 // pred_region
      _
    $region41: #{tpu_custom_call.1} parent=1 // pred_fallthru
      _
    // Predicated region
    $region42: #{tpu_custom_call.1} parent=1 // pred_check
      _
    $region43: #{tpu_custom_call.1} parent=1 // pred_check_branch
      %80 = sbr.rel (0) target = $region45
    $region44: #{tpu_custom_call.1} parent=1 // pred_region
      _
    $region45: #{tpu_custom_call.1} parent=1 // pred_fallthru
      _
    // Predicated region
    $region46: #{tpu_custom_call.1} parent=1 // pred_check
      _
    $region47: #{tpu_custom_call.1} parent=1 // pred_check_branch
      %82 = sbr.rel (0) target = $region49
    $region48: #{tpu_custom_call.1} parent=1 // pred_region
      _
    $region49: #{tpu_custom_call.1} parent=1 // pred_fallthru
      _
    // Predicated region
    $region50: #{tpu_custom_call.1} parent=1 // pred_check
      _
    $region51: #{tpu_custom_call.1} parent=1 // pred_check_branch
      %84 = sbr.rel (0) target = $region53
    $region52: #{tpu_custom_call.1} parent=1 // pred_region
      %85 = dma.done [#allocation3], 128
    $region53: #{tpu_custom_call.1} parent=1 // pred_fallthru
      _
    // Predicated region
    $region54: #{tpu_custom_call.1} parent=1 // pred_check
      _
    $region55: #{tpu_custom_call.1} parent=1 // pred_check_branch
      %87 = sbr.rel (0) target = $region57
    $region56: #{tpu_custom_call.1} parent=1 // pred_region
      %88 = dma.done [#allocation6], 128
    $region57: #{tpu_custom_call.1} parent=1 // pred_fallthru
      _
    // Predicated region
    $region58: #{tpu_custom_call.1} parent=1 // pred_check
      _
    $region59: #{tpu_custom_call.1} parent=1 // pred_check_branch
      %90 = sbr.rel (0) target = $region61
    $region60: #{tpu_custom_call.1} parent=1 // pred_region
      %91 = dma.done [#allocation6], 256
    $region61: #{tpu_custom_call.1} parent=1 // pred_fallthru
      _
    // Predicated region
    $region62: #{tpu_custom_call.1} parent=1 // pred_check
      _
    $region63: #{tpu_custom_call.1} parent=1 // pred_check_branch
      %93 = sbr.rel (0) target = $region65
    $region64: #{tpu_custom_call.1} parent=1 // pred_region
      %94 = dma.done [#allocation9], 2048
    $region65: #{tpu_custom_call.1} parent=1 // pred_fallthru
      _
    %v96 = vld [vmem:[#allocation2] sm:$0xff]
    %v97 = vpack.c.bf16 %v96, %v96
    %v98 = vld [vmem:[#allocation5] sm:$0xf]
    %v99 = vld [vmem:[#allocation5 + $0x4] sm:$0xf]
    %v100 = vld [vmem:[%s3] sm:$0x1]
    %v102 = vlaneseq
    %v103 = vshrl.u32 %v102, 7
    %v104 = vsub.s32 0, %v103
    %v105 = vrot.slane %v100, %v104
    %v109 = vunpack.c.l.b16 %v98
    %v110 = vunpack.c.l.b16 %v99
    %v111 = vpack.c.b16 %v110, %v109
    %vm113 = vcmask 130048
    %v115 = vsel %vm113, %v97, 0
    %117 = vmatprep.subr.bf16.mxu0 0
    %118 = vmatpush1.bf16.msra.mxu0 %v111
    %119 = vmatprep.subr.bf16.mxu0 0
    %120 = vmatpush1.bf16.msra.mxu0 0
    %121 = vmatprep.subr.bf16.mxu0 0
    %122 = vmatpush1.bf16.msra.mxu0 0
    %123 = vmatprep.subr.bf16.mxu0 0
    %124 = vmatpush1.bf16.msra.mxu0 0
    %125 = vmatprep.subr.bf16.mxu0 0
    %126 = vmatpush1.bf16.msra.mxu0 0
    %127 = vmatprep.subr.bf16.mxu0 0
    %128 = vmatpush1.bf16.msra.mxu0 0
    %129 = vmatprep.subr.bf16.mxu0 0
    %130 = vmatpush1.bf16.msra.mxu0 0
    %131 = vmatprep.subr.bf16.mxu0 0
    %132 = vmatpush1.bf16.msra.mxu0 0
    %133 = vmatprep.subr.bf16.mxu0 0
    %134 = vmatpush1.bf16.msra.mxu0 0
    %135 = vmatprep.subr.bf16.mxu0 0
    %136 = vmatpush1.bf16.msra.mxu0 0
    %137 = vmatprep.subr.bf16.mxu0 0
    %138 = vmatpush1.bf16.msra.mxu0 0
    %139 = vmatprep.subr.bf16.mxu0 0
    %140 = vmatpush1.bf16.msra.mxu0 0
    %141 = vmatprep.subr.bf16.mxu0 0
    %142 = vmatpush1.bf16.msra.mxu0 0
    %143 = vmatprep.subr.bf16.mxu0 0
    %144 = vmatpush1.bf16.msra.mxu0 0
    %145 = vmatprep.subr.bf16.mxu0 0
    %146 = vmatpush1.bf16.msra.mxu0 0
    %147 = vmatprep.subr.bf16.mxu0 0
    %148 = vmatpush1.bf16.msra.mxu0 0
    %149 = vmatprep.mubr.bf16.mxu0 0
    %150 = vmatmul.mubr.bf16.gmra.mrb[0].mxu0 %v115
    %v151 = vpop.f32.mrb[0].mxu0
    %v152 = vadd.f32 %v105, %v151
    %v153 = vpop.f32.mrb[0].mxu0
    %v154 = vpop.f32.mrb[0].mxu0
    %v155 = vpop.f32.mrb[0].mxu0
    %156 = vdwg.mxu0
    %vm157 = vcmp.gt.f32.partialorder %v152, 20.0
    %v158 = vmin.f32 %v152, 20.0
    %v159 = vmul.f32 %v158, 1.442695
    %v160 = vpow.pop %v159
    %v161 = vadd.f32 %v160, 1.0
    %v162 = vlog2.pop %v161
    %v163 = vmul.f32 %v162, 0.6931472
    %v164 = vmul.f32 -0.5, %v160
    %v165 = vadd.f32 %v164, 1.0
    %v166 = vmul.f32 %v165, %v160
    %v167 = vand.u32 2147483647, %v160
    %vm168 = vcmp.lt.f32.partialorder %v167, 0.0004427343
    %v169 = vsel %vm168, %v166, %v163
    %v170 = vsel %vm157, %v152, %v169
    %v171 = vtanh.pop %v170
    %v172 = vmul.f32 %v152, %v171
    %v173 = vpack.c.bf16 %v172, %v172
    %v174 = vld [vmem:[%s4] sm:$0xf]
    %v175 = vld [vmem:[%s4 + $0x4] sm:$0xf]
    %v176 = vld [vmem:[%s4 + $0x8] sm:$0xf]
    %v177 = vld [vmem:[%s4 + $0xc] sm:$0xf]
    %v178 = vld [vmem:[%s4 + $0x10] sm:$0xf]
    %v179 = vld [vmem:[%s4 + $0x14] sm:$0xf]
    %v180 = vld [vmem:[%s4 + $0x18] sm:$0xf]
    %v181 = vld [vmem:[%s4 + $0x1c] sm:$0xf]
    %v182 = vld [vmem:[%s5] sm:$0x1]
    %v184 = vlaneseq
    %v185 = vshrl.u32 %v184, 7
    %v186 = vsub.s32 0, %v185
    %v187 = vrot.slane %v182, %v186
    %v197 = vunpack.c.l.b16 %v174
    %v198 = vunpack.c.l.b16 %v175
    %v199 = vunpack.c.l.b16 %v176
    %v200 = vunpack.c.l.b16 %v177
    %v201 = vunpack.c.l.b16 %v178
    %v202 = vunpack.c.l.b16 %v179
    %v203 = vunpack.c.l.b16 %v180
    %v204 = vunpack.c.l.b16 %v181
    %v205 = vpack.c.b16 %v198, %v197
    %v206 = vpack.c.b16 %v200, %v199
    %v207 = vpack.c.b16 %v202, %v201
    %v208 = vpack.c.b16 %v204, %v203
    %vm213 = vcmask 523264
    %v215 = vsel %vm213, %v173, 0
    %217 = vmatprep.subr.bf16.mxu0 0
    %218 = vmatpush1.bf16.msra.mxu0 %v205
    %219 = vmatprep.subr.bf16.mxu0 0
    %220 = vmatpush1.bf16.msra.mxu0 %v206
    %221 = vmatprep.subr.bf16.mxu0 0
    %222 = vmatpush1.bf16.msra.mxu0 %v207
    %223 = vmatprep.subr.bf16.mxu0 0
    %224 = vmatpush1.bf16.msra.mxu0 %v208
    %225 = vmatprep.subr.bf16.mxu0 0
    %226 = vmatpush1.bf16.msra.mxu0 0
    %227 = vmatprep.subr.bf16.mxu0 0
    %228 = vmatpush1.bf16.msra.mxu0 0
    %229 = vmatprep.subr.bf16.mxu0 0
    %230 = vmatpush1.bf16.msra.mxu0 0
    %231 = vmatprep.subr.bf16.mxu0 0
    %232 = vmatpush1.bf16.msra.mxu0 0
    %233 = vmatprep.subr.bf16.mxu0 0
    %234 = vmatpush1.bf16.msra.mxu0 0
    %235 = vmatprep.subr.bf16.mxu0 0
    %236 = vmatpush1.bf16.msra.mxu0 0
    %237 = vmatprep.subr.bf16.mxu0 0
    %238 = vmatpush1.bf16.msra.mxu0 0
    %239 = vmatprep.subr.bf16.mxu0 0
    %240 = vmatpush1.bf16.msra.mxu0 0
    %241 = vmatprep.subr.bf16.mxu0 0
    %242 = vmatpush1.bf16.msra.mxu0 0
    %243 = vmatprep.subr.bf16.mxu0 0
    %244 = vmatpush1.bf16.msra.mxu0 0
    %245 = vmatprep.subr.bf16.mxu0 0
    %246 = vmatpush1.bf16.msra.mxu0 0
    %247 = vmatprep.subr.bf16.mxu0 0
    %248 = vmatpush1.bf16.msra.mxu0 0
    %249 = vmatprep.mubr.bf16.mxu0 0
    %250 = vmatmul.mubr.bf16.gmra.mrb[0].mxu0 %v215
    %v251 = vpop.f32.mrb[0].mxu0
    %v252 = vadd.f32 %v187, %v251
    %v253 = vpop.f32.mrb[0].mxu0
    %v254 = vpop.f32.mrb[0].mxu0
    %v255 = vpop.f32.mrb[0].mxu0
    %256 = vdwg.mxu0
    %v257 = vld [vmem:[%s0] sm:$0xff]
    %v258 = vlaneseq
    %v259 = vshrl.u32 %v258, 7
    %v260 = vsub.s32 0, %v259
    %v261 = vrot.slane %v252, %v260
    %v262 = vadd.f32 %v257, %v261
    %v263 = vpack.c.bf16 %v262, %v262
    %v264 = vld [vmem:[#allocation7] sm:$0xff]
    %v265 = vld [vmem:[#allocation7 + $0x8] sm:$0xff]
    %v266 = vld [vmem:[%s7] sm:$0x3]
    %v268 = vlaneseq
    %v269 = vshrl.u32 %v268, 7
    %v270 = vsub.s32 0, %v269
    %v271 = vrot.slane %v266, %v270
    %v272 = vlaneseq
    %v273 = vshrl.u32 %v272, 7
    %v274 = vsub.s32 1, %v273
    %v275 = vrot.slane %v266, %v274
    %v280 = vunpack.c.l.b16 %v264
    %v281 = vunpack.c.h.b16 %v264
    %v282 = vunpack.c.l.b16 %v265
    %v283 = vunpack.c.h.b16 %v265
    %v284 = vpack.c.b16 %v282, %v280
    %v285 = vpack.c.b16 %v283, %v281
    %v289 = vsel %vm113, %v263, 0
    %291 = vmatprep.subr.bf16.mxu0 %v285
    %292 = vmatpush1.bf16.msra.mxu0 %v284
    %293 = vmatprep.subr.bf16.mxu0 0
    %294 = vmatpush1.bf16.msra.mxu0 0
    %295 = vmatprep.subr.bf16.mxu0 0
    %296 = vmatpush1.bf16.msra.mxu0 0
    %297 = vmatprep.subr.bf16.mxu0 0
    %298 = vmatpush1.bf16.msra.mxu0 0
    %299 = vmatprep.subr.bf16.mxu0 0
    %300 = vmatpush1.bf16.msra.mxu0 0
    %301 = vmatprep.subr.bf16.mxu0 0
    %302 = vmatpush1.bf16.msra.mxu0 0
    %303 = vmatprep.subr.bf16.mxu0 0
    %304 = vmatpush1.bf16.msra.mxu0 0
    %305 = vmatprep.subr.bf16.mxu0 0
    %306 = vmatpush1.bf16.msra.mxu0 0
    %307 = vmatprep.subr.bf16.mxu0 0
    %308 = vmatpush1.bf16.msra.mxu0 0
    %309 = vmatprep.subr.bf16.mxu0 0
    %310 = vmatpush1.bf16.msra.mxu0 0
    %311 = vmatprep.subr.bf16.mxu0 0
    %312 = vmatpush1.bf16.msra.mxu0 0
    %313 = vmatprep.subr.bf16.mxu0 0
    %314 = vmatpush1.bf16.msra.mxu0 0
    %315 = vmatprep.subr.bf16.mxu0 0
    %316 = vmatpush1.bf16.msra.mxu0 0
    %317 = vmatprep.subr.bf16.mxu0 0
    %318 = vmatpush1.bf16.msra.mxu0 0
    %319 = vmatprep.subr.bf16.mxu0 0
    %320 = vmatpush1.bf16.msra.mxu0 0
    %321 = vmatprep.subr.bf16.mxu0 0
    %322 = vmatpush1.bf16.msra.mxu0 0
    %323 = vmatprep.mubr.bf16.mxu0 0
    %324 = vmatmul.mubr.bf16.gmra.mrb[0].mxu0 %v289
    %v325 = vpop.f32.mrb[0].mxu0
    %v326 = vadd.f32 %v271, %v325
    %v327 = vpop.f32.mrb[0].mxu0
    %v328 = vadd.f32 %v275, %v327
    %v329 = vpop.f32.mrb[0].mxu0
    %v330 = vpop.f32.mrb[0].mxu0
    %331 = vdwg.mxu0
    %v332 = vmax.f32 %v326, 0.0
    %v333 = vmax.f32 %v328, 0.0
    %v334 = vpack.c.bf16 %v332, %v332
    %v335 = vpack.c.bf16 %v333, %v333
    %v336 = vld [vmem:[#allocation8] sm:$0xf]
    %v337 = vld [vmem:[#allocation8 + $0x4] sm:$0xf]
    %v338 = vld [vmem:[#allocation8 + $0x8] sm:$0xf]
    %v339 = vld [vmem:[#allocation8 + $0xc] sm:$0xf]
    %v340 = vld [vmem:[#allocation8 + $0x10] sm:$0xf]
    %v341 = vld [vmem:[#allocation8 + $0x14] sm:$0xf]
    %v342 = vld [vmem:[#allocation8 + $0x18] sm:$0xf]
    %v343 = vld [vmem:[#allocation8 + $0x1c] sm:$0xf]
    %v344 = vld [vmem:[#allocation8 + $0x20] sm:$0xf]
    %v345 = vld [vmem:[#allocation8 + $0x24] sm:$0xf]
    %v346 = vld [vmem:[#allocation8 + $0x28] sm:$0xf]
    %v347 = vld [vmem:[#allocation8 + $0x2c] sm:$0xf]
    %v348 = vld [vmem:[#allocation8 + $0x30] sm:$0xf]
    %v349 = vld [vmem:[#allocation8 + $0x34] sm:$0xf]
    %v350 = vld [vmem:[#allocation8 + $0x38] sm:$0xf]
    %v351 = vld [vmem:[#allocation8 + $0x3c] sm:$0xf]
    %v352 = vld [vmem:[#allocation8 + $0x40] sm:$0xf]
    %v353 = vld [vmem:[#allocation8 + $0x44] sm:$0xf]
    %v354 = vld [vmem:[#allocation8 + $0x48] sm:$0xf]
    %v355 = vld [vmem:[#allocation8 + $0x4c] sm:$0xf]
    %v356 = vld [vmem:[#allocation8 + $0x50] sm:$0xf]
    %v357 = vld [vmem:[#allocation8 + $0x54] sm:$0xf]
    %v358 = vld [vmem:[#allocation8 + $0x58] sm:$0xf]
    %v359 = vld [vmem:[#allocation8 + $0x5c] sm:$0xf]
    %v360 = vld [vmem:[#allocation8 + $0x60] sm:$0xf]
    %v361 = vld [vmem:[#allocation8 + $0x64] sm:$0xf]
    %v362 = vld [vmem:[#allocation8 + $0x68] sm:$0xf]
    %v363 = vld [vmem:[#allocation8 + $0x6c] sm:$0xf]
    %v364 = vld [vmem:[#allocation8 + $0x70] sm:$0xf]
    %v365 = vld [vmem:[#allocation8 + $0x74] sm:$0xf]
    %v366 = vld [vmem:[#allocation8 + $0x78] sm:$0xf]
    %v367 = vld [vmem:[#allocation8 + $0x7c] sm:$0xf]
    %v368 = vld [vmem:[%s9] sm:$0x1]
    %v370 = vlaneseq
    %v371 = vshrl.u32 %v370, 7
    %v372 = vsub.s32 0, %v371
    %v373 = vrot.slane %v368, %v372
    %v407 = vunpack.c.l.b16 %v336
    %v408 = vunpack.c.l.b16 %v337
    %v409 = vunpack.c.l.b16 %v338
    %v410 = vunpack.c.l.b16 %v339
    %v411 = vunpack.c.l.b16 %v340
    %v412 = vunpack.c.l.b16 %v341
    %v413 = vunpack.c.l.b16 %v342
    %v414 = vunpack.c.l.b16 %v343
    %v415 = vunpack.c.l.b16 %v344
    %v416 = vunpack.c.l.b16 %v345
    %v417 = vunpack.c.l.b16 %v346
    %v418 = vunpack.c.l.b16 %v347
    %v419 = vunpack.c.l.b16 %v348
    %v420 = vunpack.c.l.b16 %v349
    %v421 = vunpack.c.l.b16 %v350
    %v422 = vunpack.c.l.b16 %v351
    %v423 = vunpack.c.l.b16 %v352
    %v424 = vunpack.c.l.b16 %v353
    %v425 = vunpack.c.l.b16 %v354
    %v426 = vunpack.c.l.b16 %v355
    %v427 = vunpack.c.l.b16 %v356
    %v428 = vunpack.c.l.b16 %v357
    %v429 = vunpack.c.l.b16 %v358
    %v430 = vunpack.c.l.b16 %v359
    %v431 = vunpack.c.l.b16 %v360
    %v432 = vunpack.c.l.b16 %v361
    %v433 = vunpack.c.l.b16 %v362
    %v434 = vunpack.c.l.b16 %v363
    %v435 = vunpack.c.l.b16 %v364
    %v436 = vunpack.c.l.b16 %v365
    %v437 = vunpack.c.l.b16 %v366
    %v438 = vunpack.c.l.b16 %v367
    %v439 = vpack.c.b16 %v408, %v407
    %v440 = vpack.c.b16 %v410, %v409
    %v441 = vpack.c.b16 %v412, %v411
    %v442 = vpack.c.b16 %v414, %v413
    %v443 = vpack.c.b16 %v416, %v415
    %v444 = vpack.c.b16 %v418, %v417
    %v445 = vpack.c.b16 %v420, %v419
    %v446 = vpack.c.b16 %v422, %v421
    %v447 = vpack.c.b16 %v424, %v423
    %v448 = vpack.c.b16 %v426, %v425
    %v449 = vpack.c.b16 %v428, %v427
    %v450 = vpack.c.b16 %v430, %v429
    %v451 = vpack.c.b16 %v432, %v431
    %v452 = vpack.c.b16 %v434, %v433
    %v453 = vpack.c.b16 %v436, %v435
    %v454 = vpack.c.b16 %v438, %v437
    %471 = vmatprep.subr.bf16.mxu0 0
    %472 = vmatpush1.bf16.msra.mxu0 %v439
    %473 = vmatprep.subr.bf16.mxu0 0
    %474 = vmatpush1.bf16.msra.mxu0 %v440
    %475 = vmatprep.subr.bf16.mxu0 0
    %476 = vmatpush1.bf16.msra.mxu0 %v441
    %477 = vmatprep.subr.bf16.mxu0 0
    %478 = vmatpush1.bf16.msra.mxu0 %v442
    %479 = vmatprep.subr.bf16.mxu0 0
    %480 = vmatpush1.bf16.msra.mxu0 %v443
    %481 = vmatprep.subr.bf16.mxu0 0
    %482 = vmatpush1.bf16.msra.mxu0 %v444
    %483 = vmatprep.subr.bf16.mxu0 0
    %484 = vmatpush1.bf16.msra.mxu0 %v445
    %485 = vmatprep.subr.bf16.mxu0 0
    %486 = vmatpush1.bf16.msra.mxu0 %v446
    %487 = vmatprep.subr.bf16.mxu0 0
    %488 = vmatpush1.bf16.msra.mxu0 %v447
    %489 = vmatprep.subr.bf16.mxu0 0
    %490 = vmatpush1.bf16.msra.mxu0 %v448
    %491 = vmatprep.subr.bf16.mxu0 0
    %492 = vmatpush1.bf16.msra.mxu0 %v449
    %493 = vmatprep.subr.bf16.mxu0 0
    %494 = vmatpush1.bf16.msra.mxu0 %v450
    %495 = vmatprep.subr.bf16.mxu0 0
    %496 = vmatpush1.bf16.msra.mxu0 %v451
    %497 = vmatprep.subr.bf16.mxu0 0
    %498 = vmatpush1.bf16.msra.mxu0 %v452
    %499 = vmatprep.subr.bf16.mxu0 0
    %500 = vmatpush1.bf16.msra.mxu0 %v453
    %501 = vmatprep.subr.bf16.mxu0 0
    %502 = vmatpush1.bf16.msra.mxu0 %v454
    %503 = vmatprep.mubr.bf16.mxu0 %v335
    %504 = vmatmul.mubr.bf16.gmra.mrb[0].mxu0 %v334
    %v505 = vpop.f32.mrb[0].mxu0
    %v506 = vadd.f32 %v373, %v505
    %v507 = vpop.f32.mrb[0].mxu0
    %v508 = vpop.f32.mrb[0].mxu0
    %v509 = vpop.f32.mrb[0].mxu0
    %510 = vdwg.mxu0
    %v511 = vmax.f32 %v506, 0.0
    %v512 = vpack.c.bf16 %v511, %v511
    %v513 = vld [vmem:[%s10] sm:$0xf]
    %v514 = vld [vmem:[%s10 + $0x4] sm:$0xf]
    %v515 = vld [vmem:[%s10 + $0x8] sm:$0xf]
    %v516 = vld [vmem:[%s10 + $0xc] sm:$0xf]
    %v517 = vld [vmem:[%s10 + $0x10] sm:$0xf]
    %v518 = vld [vmem:[%s10 + $0x14] sm:$0xf]
    %v519 = vld [vmem:[%s10 + $0x18] sm:$0xf]
    %v520 = vld [vmem:[%s10 + $0x1c] sm:$0xf]
    %v521 = vld [vmem:[%s10 + $0x20] sm:$0xf]
    %v522 = vld [vmem:[%s10 + $0x24] sm:$0xf]
    %v523 = vld [vmem:[%s10 + $0x28] sm:$0xf]
    %v524 = vld [vmem:[%s10 + $0x2c] sm:$0xf]
    %v525 = vld [vmem:[%s10 + $0x30] sm:$0xf]
    %v526 = vld [vmem:[%s10 + $0x34] sm:$0xf]
    %v527 = vld [vmem:[%s10 + $0x38] sm:$0xf]
    %v528 = vld [vmem:[%s10 + $0x3c] sm:$0xf]
    %v529 = vld [vmem:[%s11] sm:$0x1]
    %v531 = vlaneseq
    %v532 = vshrl.u32 %v531, 7
    %v533 = vsub.s32 0, %v532
    %v534 = vrot.slane %v529, %v533
    %v552 = vunpack.c.l.b16 %v513
    %v553 = vunpack.c.l.b16 %v514
    %v554 = vunpack.c.l.b16 %v515
    %v555 = vunpack.c.l.b16 %v516
    %v556 = vunpack.c.l.b16 %v517
    %v557 = vunpack.c.l.b16 %v518
    %v558 = vunpack.c.l.b16 %v519
    %v559 = vunpack.c.l.b16 %v520
    %v560 = vunpack.c.l.b16 %v521
    %v561 = vunpack.c.l.b16 %v522
    %v562 = vunpack.c.l.b16 %v523
    %v563 = vunpack.c.l.b16 %v524
    %v564 = vunpack.c.l.b16 %v525
    %v565 = vunpack.c.l.b16 %v526
    %v566 = vunpack.c.l.b16 %v527
    %v567 = vunpack.c.l.b16 %v528
    %v568 = vpack.c.b16 %v553, %v552
    %v569 = vpack.c.b16 %v555, %v554
    %v570 = vpack.c.b16 %v557, %v556
    %v571 = vpack.c.b16 %v559, %v558
    %v572 = vpack.c.b16 %v561, %v560
    %v573 = vpack.c.b16 %v563, %v562
    %v574 = vpack.c.b16 %v565, %v564
    %v575 = vpack.c.b16 %v567, %v566
    %584 = vmatprep.subr.bf16.mxu0 0
    %585 = vmatpush1.bf16.msra.mxu0 %v568
    %586 = vmatprep.subr.bf16.mxu0 0
    %587 = vmatpush1.bf16.msra.mxu0 %v569
    %588 = vmatprep.subr.bf16.mxu0 0
    %589 = vmatpush1.bf16.msra.mxu0 %v570
    %590 = vmatprep.subr.bf16.mxu0 0
    %591 = vmatpush1.bf16.msra.mxu0 %v571
    %592 = vmatprep.subr.bf16.mxu0 0
    %593 = vmatpush1.bf16.msra.mxu0 %v572
    %594 = vmatprep.subr.bf16.mxu0 0
    %595 = vmatpush1.bf16.msra.mxu0 %v573
    %596 = vmatprep.subr.bf16.mxu0 0
    %597 = vmatpush1.bf16.msra.mxu0 %v574
    %598 = vmatprep.subr.bf16.mxu0 0
    %599 = vmatpush1.bf16.msra.mxu0 %v575
    %600 = vmatprep.subr.bf16.mxu0 0
    %601 = vmatpush1.bf16.msra.mxu0 0
    %602 = vmatprep.subr.bf16.mxu0 0
    %603 = vmatpush1.bf16.msra.mxu0 0
    %604 = vmatprep.subr.bf16.mxu0 0
    %605 = vmatpush1.bf16.msra.mxu0 0
    %606 = vmatprep.subr.bf16.mxu0 0
    %607 = vmatpush1.bf16.msra.mxu0 0
    %608 = vmatprep.subr.bf16.mxu0 0
    %609 = vmatpush1.bf16.msra.mxu0 0
    %610 = vmatprep.subr.bf16.mxu0 0
    %611 = vmatpush1.bf16.msra.mxu0 0
    %612 = vmatprep.subr.bf16.mxu0 0
    %613 = vmatpush1.bf16.msra.mxu0 0
    %614 = vmatprep.subr.bf16.mxu0 0
    %615 = vmatpush1.bf16.msra.mxu0 0
    %616 = vmatprep.mubr.bf16.mxu0 0
    %617 = vmatmul.mubr.bf16.gmra.mrb[0].mxu0 %v512
    %v618 = vpop.f32.mrb[0].mxu0
    %v619 = vadd.f32 %v534, %v618
    %v620 = vpop.f32.mrb[0].mxu0
    %v621 = vpop.f32.mrb[0].mxu0
    %v622 = vpop.f32.mrb[0].mxu0
    %623 = vdwg.mxu0
    %624 = vst [vmem:[#allocation10] sm:$0xff] %v619
    // Predicated region
    $region66: #{tpu_custom_call.1} parent=1 // pred_check
      _
    $region67: #{tpu_custom_call.1} parent=1 // pred_check_branch
      %626 = sbr.rel (0) target = $region69
    $region68: #{tpu_custom_call.1} parent=1 // pred_region
      %s628 = ssub.s32 128, 128
      %629 = vsyncadd [#allocation4], %s628
      %s631 = sshll.u32 [#allocation10], 4
      %s632 = int_to_ptr.vmem [resolvable:$true] %s631
      %634 = dma.vmem_to_hbm [thread:$0]  %s632, 128, %s12, [#allocation4]
    $region69: #{tpu_custom_call.1} parent=1 // pred_fallthru
      _
    // Predicated region
    $region70: #{tpu_custom_call.1} parent=1 // pred_check
      _
    $region71: #{tpu_custom_call.1} parent=1 // pred_check_branch
      %636 = sbr.rel (0) target = $region73
    $region72: #{tpu_custom_call.1} parent=1 // pred_region
      %637 = dma.done [#allocation4], 128
    $region73: #{tpu_custom_call.1} parent=1 // pred_fallthru
      _
    %638 = vsyncpa [#allocation3], 1
    %639 = vsyncpa [#allocation6], 1
    %640 = vsyncpa [#allocation9], 1
    %641 = vsyncpa [#allocation4], 1

</llo_original>
